<compile_context>
chip_gen: v7x
topology: tpu7x:2x2x1
jax: 0.10.0
libtpu: 0.0.40
codegen_flags: <defaults>
</compile_context>

<pallas_src>
import jax
import jax.numpy as jnp
from jax.experimental import pallas as pl
from jax.experimental.pallas import tpu as pltpu


def _round_up(x, m):
    return ((x + m - 1) // m) * m


def _cdiv(a, b):
    return -(-a // b)


def router_kernel(x_ref, w_ref, b_ref, out_ref):
    # x_ref  : (TN, K)     f32 flattened patches (streamed, no separate cast pass)
    # w_ref  : (K,  E_pad) f32 fused projection (conv ∘ normalized-keysᵀ ∘ temp/sqrt(D))
    # b_ref  : (1,  E_pad) f32 fused bias (-1e30 on padded expert columns)
    # out_ref: (E_sub, TN) f32 routing weights, expert-major (lane-dense along N)
    z = jnp.dot(x_ref[...], w_ref[...], preferred_element_type=jnp.float32)
    z = z + b_ref[...]
    z = z - jnp.max(z, axis=-1, keepdims=True)
    e = jnp.exp(z)                                   # padded experts -> exact 0
    p = e / jnp.sum(e, axis=-1, keepdims=True)       # exact normalization (free, HBM-bound)
    # XLU transpose (free under DMA slack); only real-expert rows hit HBM.
    out_ref[...] = p.T[:out_ref.shape[0], :]


def prepare_router_params(conv_w, conv_b, keys, logit_temp):
    """Fold patch-embedding conv, key normalization, 1/sqrt(D) and logit_temp
    into one (K, E_pad) f32 projection + (1, E_pad) f32 bias.
    Done ONCE at parameter-load time, not per forward call."""
    D = conv_w.shape[0]
    K = conv_w.size // D              # C * P * P
    E = keys.shape[0]
    E_pad = _round_up(max(E, 128), 128)   # lane-dense matmul / softmax width

    conv_w32 = conv_w.reshape(D, K).astype(jnp.float32)
    conv_b32 = conv_b.reshape(1, D).astype(jnp.float32)
    keys32 = keys.astype(jnp.float32)

    # F.normalize(keys, dim=-1): x / max(||x||, eps), eps = 1e-12.
    knorm = keys32 / jnp.maximum(
        jnp.sqrt(jnp.sum(keys32 * keys32, axis=-1, keepdims=True)), 1e-12)
    scale = jnp.asarray(logit_temp, jnp.float32) / jnp.sqrt(jnp.float32(D))

    w_fused = (conv_w32.T @ knorm.T) * scale          # (K, E)
    b_fused = (conv_b32 @ knorm.T) * scale            # (1, E)

    # Resident tile -> keep f32 (precision free, avoids argmax flips).
    w_pad = jnp.zeros((K, E_pad), jnp.float32).at[:, :E].set(w_fused)
    # Padded expert columns -> -1e30 bias -> exp underflows to exactly 0.
    b_pad = jnp.full((1, E_pad), -1e30, jnp.float32).at[:, :E].set(b_fused)
    return w_pad, b_pad, E


def _choose_tiling(n_rows, tn_max):
    """Pick (N_pad, TN, num_tiles): TN multiple of 8 (f32 sublanes), multiple of
    128 when large (lane-dense transposed output), and >=2 tiles when the
    problem is big enough so both v7x TensorCores get work."""
    n_pad = _round_up(n_rows, 8)
    num_tiles = max(1, _cdiv(n_pad, tn_max))
    if num_tiles == 1 and n_pad >= 256:
        num_tiles = 2                       # v7x: keep both TCs busy
    tn = _cdiv(n_pad, num_tiles)
    tn = _round_up(tn, 128) if tn >= 128 else _round_up(tn, 8)
    n_pad = num_tiles * tn
    return n_pad, tn, num_tiles


def router_forward(patch_nchw, w_fused, b_fused, num_experts,
                   tn_max=2048, return_transposed=False):
    """patch_nchw: (N, C, P, P) f32. Returns softmax routing weights
    (N, num_experts); with return_transposed=True returns the raw kernel output
    (E_sub, N_pad) (rows >= num_experts are exact zeros, columns >= N are
    padding) so downstream can skip the final transpose entirely."""
    N = patch_nchw.shape[0]
    K, E_pad = w_fused.shape
    E_sub = _round_up(max(num_experts, 8), 8)   # sublane-packed expert axis

    x = patch_nchw.reshape(N, K)                # free view, stays f32 in HBM
    if x.dtype != jnp.float32:
        x = x.astype(jnp.float32)

    n_pad, tn, num_tiles = _choose_tiling(N, tn_max)
    if n_pad != N:
        x = jnp.pad(x, ((0, n_pad - N), (0, 0)))

    # VMEM budget: double-buffered x/out tiles, resident fused weight/bias,
    # softmax intermediates, + headroom.
    vmem_need = (2 * tn * K * 4            # x tiles
                 + 2 * K * E_pad * 4       # fused projection
                 + 2 * E_pad * 4           # fused bias
                 + 2 * E_sub * tn * 4      # transposed output tiles
                 + 4 * tn * E_pad * 4      # z / e / pᵀ intermediates
                 + (2 << 20))
    try:
        vmem_cap = int(pltpu.get_tpu_info().vmem_capacity_bytes)   # 64 MiB v7x, 128 MiB v5e/v6e
    except Exception:
        vmem_cap = 64 << 20                 # safe on every generation
    vmem_limit = int(min(max(vmem_need, 32 << 20), vmem_cap))

    out_t = pl.pallas_call(
        router_kernel,
        out_shape=jax.ShapeDtypeStruct((E_sub, n_pad), jnp.float32),
        grid=(num_tiles,),
        in_specs=[
            pl.BlockSpec((tn, K), lambda i: (i, 0)),        # flattened patches
            pl.BlockSpec((K, E_pad), lambda i: (0, 0)),     # fused projection (resident)
            pl.BlockSpec((1, E_pad), lambda i: (0, 0)),     # fused bias (resident)
        ],
        out_specs=pl.BlockSpec((E_sub, tn), lambda i: (0, i)),
        compiler_params=pltpu.CompilerParams(
            dimension_semantics=("parallel",),
            vmem_limit_bytes=vmem_limit),
    )(x, w_fused, b_fused)

    if return_transposed:
        return out_t
    # Cheap epilogue: contiguous sublane slice + small (E, N) transpose to match
    # the module's (N, num_experts) layout.
    return out_t[:num_experts, :N].T


def router_forward_ref(patch_nchw, conv_w, conv_b, keys, logit_temp):
    """Pure-JAX f32 reference mirroring the PyTorch forward."""
    N = patch_nchw.shape[0]
    D = conv_w.shape[0]
    emb = patch_nchw.reshape(N, -1) @ conv_w.reshape(D, -1).T + conv_b
    knorm = keys / jnp.maximum(
        jnp.linalg.norm(keys, axis=-1, keepdims=True), 1e-12)
    logit = emb @ knorm.T / jnp.sqrt(jnp.float32(D))
    return jax.nn.softmax(logit * logit_temp, axis=-1)


if __name__ == "__main__":
    # Small deterministic setup consistent with the module:
    #   B=2 batches, nP=4 patches each -> N = B*nP = 8 rows
    #   embd_channel = C+4 = 8, patch_size = 4, embedd_dim = 32, num_experts = 8
    B, nP = 2, 4
    N = B * nP
    C_IN, P = 8, 4
    EMBED_DIM = 32
    NUM_EXPERTS = 8

    key0 = jax.random.PRNGKey(0)
    k_patch, k_w, k_b, k_keys, k_patch2 = jax.random.split(key0, 5)

    patch = jax.random.normal(k_patch, (N, C_IN, P, P), dtype=jnp.float32)
    conv_w = 0.1 * jax.random.normal(k_w, (EMBED_DIM, C_IN, P, P), dtype=jnp.float32)
    conv_b = 0.01 * jax.random.normal(k_b, (EMBED_DIM,), dtype=jnp.float32)
    router_keys = jax.random.normal(k_keys, (NUM_EXPERTS, EMBED_DIM), dtype=jnp.float32)
    logit_temp = jnp.float32(5.0)  # nn.Parameter(torch.tensor(5.0))

    # One-time parameter fusion (analogous to parameter-load time).
    w_fused, b_fused, n_experts = prepare_router_params(
        conv_w, conv_b, router_keys, logit_temp)

    # Case 1: tiny single-tile grid (matches the module's toy shapes).
    weights = router_forward(patch, w_fused, b_fused, n_experts)
    jax.block_until_ready(weights)
    ref = router_forward_ref(patch, conv_w, conv_b, router_keys, logit_temp)
    assert weights.shape == (N, NUM_EXPERTS)
    assert jnp.allclose(weights, ref, atol=5e-3, rtol=5e-3)
    assert jnp.allclose(jnp.sum(weights, axis=-1), 1.0, atol=1e-4)
    assert jnp.all(jnp.argmax(weights, axis=-1) == jnp.argmax(ref, axis=-1))

    # Case 2: multi-tile grid (>=2 steps -> both v7x TCs) with row padding.
    N2 = 2 * 320   # 640 rows -> 2 tiles of 384 rows, last tile row-padded
    patch2 = jax.random.normal(k_patch2, (N2, C_IN, P, P), dtype=jnp.float32)
    weights2 = router_forward(patch2, w_fused, b_fused, n_experts)
    jax.block_until_ready(weights2)
    ref2 = router_forward_ref(patch2, conv_w, conv_b, router_keys, logit_temp)
    assert weights2.shape == (N2, NUM_EXPERTS)
    assert jnp.allclose(weights2, ref2, atol=5e-3, rtol=5e-3)
    assert jnp.allclose(jnp.sum(weights2, axis=-1), 1.0, atol=1e-4)

    print("KERNEL_OK")
</pallas_src>

<mosaic_0001>
module attributes {stable_mosaic.version = 11 : i64} {
  func.func @router_kernel(%arg0: i32, %arg1: memref<8x128xf32, #tpu.memory_space<vmem>>, %arg2: memref<128x128xf32, #tpu.memory_space<vmem>>, %arg3: memref<1x128xf32, #tpu.memory_space<vmem>>, %arg4: memref<8x8xf32, #tpu.memory_space<vmem>>) attributes {dimension_semantics = [#tpu.dimension_semantics<parallel>], iteration_bounds = array<i64: 1>, scalar_prefetch = 0 : i64, scratch_operands = 0 : i64, tpu.core_type = #tpu.core_type<tc>, window_params = [{transform_indices = @transform_0, window_bounds = array<i64: 8, 128>}, {pipeline_mode = #tpu.pipeline_mode<synchronous>, transform_indices = @transform_1, window_bounds = array<i64: 128, 128>}, {pipeline_mode = #tpu.pipeline_mode<synchronous>, transform_indices = @transform_2, window_bounds = array<i64: 1, 128>}, {transform_indices = @transform_3, window_bounds = array<i64: 8, 8>}]} {
    %c0 = arith.constant 0 : index
    %c0_0 = arith.constant 0 : index
    %0 = vector.load %arg1[%c0, %c0_0] : memref<8x128xf32, #tpu.memory_space<vmem>>, vector<8x128xf32>
    %c0_1 = arith.constant 0 : index
    %c0_2 = arith.constant 0 : index
    %1 = vector.load %arg2[%c0_1, %c0_2] : memref<128x128xf32, #tpu.memory_space<vmem>>, vector<128x128xf32>
    %cst = arith.constant dense<0.000000e+00> : vector<8x128xf32>
    %2 = tpu.matmul %0, %1, %cst {dimension_numbers = #tpu.dot_dimension_numbers<[1], [0], [0], [1], [0, 0, 1, 1], [], []>} : vector<8x128xf32>, vector<128x128xf32>, vector<8x128xf32> -> vector<8x128xf32>
    %c0_3 = arith.constant 0 : index
    %c0_4 = arith.constant 0 : index
    %3 = vector.load %arg3[%c0_3, %c0_4] : memref<1x128xf32, #tpu.memory_space<vmem>>, vector<1x128xf32>
    %4 = vector.broadcast %3 : vector<1x128xf32> to vector<8x128xf32>
    %5 = arith.addf %2, %4 : vector<8x128xf32>
    %cst_5 = arith.constant dense<0xFF800000> : vector<8xf32>
    %6 = vector.multi_reduction <maximumf>, %5, %cst_5 [1] : vector<8x128xf32> to vector<8xf32>
    %7 = vector.shape_cast %6 : vector<8xf32> to vector<8x1xf32>
    %8 = vector.broadcast %7 : vector<8x1xf32> to vector<8x128xf32>
    %9 = arith.subf %5, %8 : vector<8x128xf32>
    %10 = math.exp %9 : vector<8x128xf32>
    %cst_6 = arith.constant dense<0.000000e+00> : vector<8xf32>
    %11 = vector.multi_reduction <add>, %10, %cst_6 [1] : vector<8x128xf32> to vector<8xf32>
    %12 = vector.shape_cast %11 : vector<8xf32> to vector<8x1xf32>
    %13 = vector.broadcast %12 : vector<8x1xf32> to vector<8x128xf32>
    %14 = arith.divf %10, %13 : vector<8x128xf32>
    %15 = tpu.transpose %14, [1, 0] : vector<8x128xf32> -> vector<128x8xf32>
    %16 = vector.extract_strided_slice %15 {offsets = [0, 0], sizes = [8, 8], strides = [1, 1]} : vector<128x8xf32> to vector<8x8xf32>
    %c0_7 = arith.constant 0 : index
    %c0_8 = arith.constant 0 : index
    %17 = vector.load %arg4[%c0_7, %c0_8] : memref<8x8xf32, #tpu.memory_space<vmem>>, vector<8x8xf32>
    tpu.vector_store %arg4[%c0_7, %c0_8], %16 {strides = array<i32>} : memref<8x8xf32, #tpu.memory_space<vmem>>, vector<8x8xf32>,
    return
  }
  func.func @transform_0(%arg0: i32) -> (i32, i32) {
    %c0_i32 = arith.constant 0 : i32
    %c0_i32_0 = arith.constant 0 : i32
    return %arg0, %c0_i32 : i32, i32
  }
  func.func @transform_1(%arg0: i32) -> (i32, i32) {
    %c0_i32 = arith.constant 0 : i32
    %c0_i32_0 = arith.constant 0 : i32
    %c0_i32_1 = arith.constant 0 : i32
    return %c0_i32, %c0_i32_0 : i32, i32
  }
  func.func @transform_2(%arg0: i32) -> (i32, i32) {
    %c0_i32 = arith.constant 0 : i32
    %c0_i32_0 = arith.constant 0 : i32
    %c0_i32_1 = arith.constant 0 : i32
    return %c0_i32, %c0_i32_0 : i32, i32
  }
  func.func @transform_3(%arg0: i32) -> (i32, i32) {
    %c0_i32 = arith.constant 0 : i32
    %c0_i32_0 = arith.constant 0 : i32
    return %c0_i32, %arg0 : i32, i32
  }
}

</mosaic_0001>

<llo_original>
// kernel: tpu_custom_call.1
$region0: #{tpu_custom_call.1}
  #allocation0 [shape = 'u32[]', space=smem, size = 0x4, offset = 0x4, fixed_abs, tag = 'smem constant byte address 0x4 - core index']
  #allocation1 [shape = 'u32[144,128]{1,0:T(1,128)}', space=vmem, size = 0x12000, scoped, tag = 'internal scratch']
  %s0 = inlined_call_operand.hbm [shape: f32[8,128], index: 0, kind: input, shape index: {}]
  %s1 = inlined_call_operand.hbm [shape: f32[128,128], index: 1, kind: input, shape index: {}]
  %s2 = inlined_call_operand.vmem [shape: f32[1,128], index: 2, kind: input, shape index: {}]
  %s3 = inlined_call_operand.hbm [shape: f32[8,8], index: 3, kind: output, shape index: {}]
  %s4 = sld [smem:[#allocation0]]
  $region30: #{tpu_custom_call.1} parent=0
    _
  %s6 = ssub.s32 1, %s4
  %s7 = scalar_select 0, %s6, %s4
  $region1: #{tpu_custom_call.1} parent=0
    #allocation2 [shape = 'u8[4096]{0}', space=vmem, size = 0x1000, scoped, tag = 'input window, operand 0, single buffered']
    #allocation3 [shape = 's32[1]{0}', space=sflag, size = 0x4, scoped, tag = 'scoped memory for tpu_custom_call.1']
    #allocation4 [shape = 's32[1]{0}', space=sflag, size = 0x4, scoped, tag = 'scoped memory for tpu_custom_call.1']
    #allocation5 [shape = 'u8[65536]{0}', space=vmem, size = 0x10000, scoped, tag = 'input window, operand 1, single buffered']
    #allocation6 [shape = 's32[1]{0}', space=sflag, size = 0x4, scoped, tag = 'scoped memory for tpu_custom_call.1']
    #allocation7 [shape = 'u8[4096]{0}', space=vmem, size = 0x1000, scoped, tag = 'output window, operand 0, single buffered']
    %8 = vsyncpa [#allocation3], 0
    %9 = vsyncpa [#allocation6], 0
    %10 = vsyncpa [#allocation4], 0
    // Predicated region
    $region2: #{tpu_custom_call.1} parent=1 // pred_check
      _
    $region3: #{tpu_custom_call.1} parent=1 // pred_check_branch
      %12 = sbr.rel (0) target = $region5
    $region4: #{tpu_custom_call.1} parent=1 // pred_region
      %s14 = ssub.s32 128, 128
      %15 = vsyncadd [#allocation3], %s14
      %s17 = sshll.u32 [#allocation2], 4
      %s18 = int_to_ptr.vmem [resolvable:$true] %s17
      %20 = dma.hbm_to_vmem [thread:$0]  %s0, 128, %s18, [#allocation3]
    $region5: #{tpu_custom_call.1} parent=1 // pred_fallthru
      _
    // Predicated region
    $region6: #{tpu_custom_call.1} parent=1 // pred_check
      _
    $region7: #{tpu_custom_call.1} parent=1 // pred_check_branch
      %22 = sbr.rel (0) target = $region9
    $region8: #{tpu_custom_call.1} parent=1 // pred_region
      %s24 = ssub.s32 2048, 2048
      %25 = vsyncadd [#allocation6], %s24
      %s26 = sshll.u32 [#allocation5], 4
      %s27 = int_to_ptr.vmem [resolvable:$true] %s26
      %32 = dma.hbm_to_vmem [thread:$0]  %s1, 2048, %s27, [#allocation6], 128, 128, 8
    $region9: #{tpu_custom_call.1} parent=1 // pred_fallthru
      _
    // Predicated region
    $region10: #{tpu_custom_call.1} parent=1 // pred_check
      _
    $region11: #{tpu_custom_call.1} parent=1 // pred_check_branch
      %34 = sbr.rel (0) target = $region13
    $region12: #{tpu_custom_call.1} parent=1 // pred_region
      _
    $region13: #{tpu_custom_call.1} parent=1 // pred_fallthru
      _
    // Predicated region
    $region14: #{tpu_custom_call.1} parent=1 // pred_check
      _
    $region15: #{tpu_custom_call.1} parent=1 // pred_check_branch
      %36 = sbr.rel (0) target = $region17
    $region16: #{tpu_custom_call.1} parent=1 // pred_region
      %37 = dma.done [#allocation3], 128
    $region17: #{tpu_custom_call.1} parent=1 // pred_fallthru
      _
    // Predicated region
    $region18: #{tpu_custom_call.1} parent=1 // pred_check
      _
    $region19: #{tpu_custom_call.1} parent=1 // pred_check_branch
      %39 = sbr.rel (0) target = $region21
    $region20: #{tpu_custom_call.1} parent=1 // pred_region
      %40 = dma.done [#allocation6], 2048
    $region21: #{tpu_custom_call.1} parent=1 // pred_fallthru
      _
    %v41 = vld [vmem:[#allocation2] sm:$0xff]
    %v42 = vld [vmem:[#allocation5] sm:$0xff]
    %v43 = vld [vmem:[#allocation5 + $0x8] sm:$0xff]
    %v44 = vld [vmem:[#allocation5 + $0x10] sm:$0xff]
    %v45 = vld [vmem:[#allocation5 + $0x18] sm:$0xff]
    %v46 = vld [vmem:[#allocation5 + $0x20] sm:$0xff]
    %v47 = vld [vmem:[#allocation5 + $0x28] sm:$0xff]
    %v48 = vld [vmem:[#allocation5 + $0x30] sm:$0xff]
    %v49 = vld [vmem:[#allocation5 + $0x38] sm:$0xff]
    %v50 = vld [vmem:[#allocation5 + $0x40] sm:$0xff]
    %v51 = vld [vmem:[#allocation5 + $0x48] sm:$0xff]
    %v52 = vld [vmem:[#allocation5 + $0x50] sm:$0xff]
    %v53 = vld [vmem:[#allocation5 + $0x58] sm:$0xff]
    %v54 = vld [vmem:[#allocation5 + $0x60] sm:$0xff]
    %v55 = vld [vmem:[#allocation5 + $0x68] sm:$0xff]
    %v56 = vld [vmem:[#allocation5 + $0x70] sm:$0xff]
    %v57 = vld [vmem:[#allocation5 + $0x78] sm:$0xff]
    %v58 = vld [vmem:[%s2] sm:$0x1]
    %v60 = vlaneseq
    %v61 = vshrl.u32 %v60, 7
    %v62 = vsub.s32 0, %v61
    %v63 = vrot.slane %v58, %v62
    %65 = vmatprep.subr.mxu0 0.0
    %66 = vmatpush1.msra.mxu0 %v42
    %67 = vmatprep.subr.mxu0 0.0
    %68 = vmatpush1.msra.mxu0 %v43
    %69 = vmatprep.subr.mxu0 0.0
    %70 = vmatpush1.msra.mxu0 %v44
    %71 = vmatprep.subr.mxu0 0.0
    %72 = vmatpush1.msra.mxu0 %v45
    %73 = vmatprep.subr.mxu0 0.0
    %74 = vmatpush1.msra.mxu0 %v46
    %75 = vmatprep.subr.mxu0 0.0
    %76 = vmatpush1.msra.mxu0 %v47
    %77 = vmatprep.subr.mxu0 0.0
    %78 = vmatpush1.msra.mxu0 %v48
    %79 = vmatprep.subr.mxu0 0.0
    %80 = vmatpush1.msra.mxu0 %v49
    %81 = vmatprep.subr.mxu0 0.0
    %82 = vmatpush1.msra.mxu0 %v50
    %83 = vmatprep.subr.mxu0 0.0
    %84 = vmatpush1.msra.mxu0 %v51
    %85 = vmatprep.subr.mxu0 0.0
    %86 = vmatpush1.msra.mxu0 %v52
    %87 = vmatprep.subr.mxu0 0.0
    %88 = vmatpush1.msra.mxu0 %v53
    %89 = vmatprep.subr.mxu0 0.0
    %90 = vmatpush1.msra.mxu0 %v54
    %91 = vmatprep.subr.mxu0 0.0
    %92 = vmatpush1.msra.mxu0 %v55
    %93 = vmatprep.subr.mxu0 0.0
    %94 = vmatpush1.msra.mxu0 %v56
    %95 = vmatprep.subr.mxu0 0.0
    %96 = vmatpush1.msra.mxu0 %v57
    %97 = vmatprep.subr.mxu0 0.0
    %98 = vmatpush1.msra.mxu0 0.0
    %99 = vmatprep.subr.mxu0 0.0
    %100 = vmatpush1.msra.mxu0 0.0
    %101 = vmatprep.subr.mxu0 0.0
    %102 = vmatpush1.msra.mxu0 0.0
    %103 = vmatprep.subr.mxu0 0.0
    %104 = vmatpush1.msra.mxu0 0.0
    %105 = vmatprep.subr.mxu0 0.0
    %106 = vmatpush1.msra.mxu0 0.0
    %107 = vmatprep.subr.mxu0 0.0
    %108 = vmatpush1.msra.mxu0 0.0
    %109 = vmatprep.subr.mxu0 0.0
    %110 = vmatpush1.msra.mxu0 0.0
    %111 = vmatprep.subr.mxu0 0.0
    %112 = vmatpush1.msra.mxu0 0.0
    %113 = vmatprep.subr.mxu0 0.0
    %114 = vmatpush1.msra.mxu0 0.0
    %115 = vmatprep.subr.mxu0 0.0
    %116 = vmatpush1.msra.mxu0 0.0
    %117 = vmatprep.subr.mxu0 0.0
    %118 = vmatpush1.msra.mxu0 0.0
    %119 = vmatprep.subr.mxu0 0.0
    %120 = vmatpush1.msra.mxu0 0.0
    %121 = vmatprep.subr.mxu0 0.0
    %122 = vmatpush1.msra.mxu0 0.0
    %123 = vmatprep.subr.mxu0 0.0
    %124 = vmatpush1.msra.mxu0 0.0
    %125 = vmatprep.subr.mxu0 0.0
    %126 = vmatpush1.msra.mxu0 0.0
    %127 = vmatprep.subr.mxu0 0.0
    %128 = vmatpush1.msra.mxu0 0.0
    %129 = vmatprep.mubr.f32.mxu0 0.0
    %130 = vmatmul.mubr.f32.gmra.mrb[0].mxu0 %v41
    %v131 = vpop.f32.mrb[0].mxu0
    %v132 = vadd.f32 %v63, %v131
    %v133 = vpop.f32.mrb[0].mxu0
    %134 = vdwg.mxu0
    %135 = vmax.xlane.f32.xlu0 %v132
    %v136 = vpop.xlane.xlu0 %135
    %v137 = vsub.f32 %v132, %v136
    %v138 = vmul.f32 %v137, 1.442695
    %v139 = vpow.pop %v138
    %140 = vadd.xlane.f32.xlu0 %v139
    %v141 = vpop.xlane.xlu0 %140
    %v142 = vrcp.pop %v141
    %v143 = vmul.f32 %v139, %v142
    %144 = vxpose.xlu0.b32.start [1/16] %v143, 128
    %145 = vxpose.xlu0.b32.cont [2/16] 0.0, 128
    %146 = vxpose.xlu0.b32.cont [3/16] 0.0, 128
    %147 = vxpose.xlu0.b32.cont [4/16] 0.0, 128
    %148 = vxpose.xlu0.b32.cont [5/16] 0.0, 128
    %149 = vxpose.xlu0.b32.cont [6/16] 0.0, 128
    %150 = vxpose.xlu0.b32.cont [7/16] 0.0, 128
    %151 = vxpose.xlu0.b32.cont [8/16] 0.0, 128
    %152 = vxpose.xlu0.b32.cont [9/16] 0.0, 128
    %153 = vxpose.xlu0.b32.cont [10/16] 0.0, 128
    %154 = vxpose.xlu0.b32.cont [11/16] 0.0, 128
    %155 = vxpose.xlu0.b32.cont [12/16] 0.0, 128
    %156 = vxpose.xlu0.b32.cont [13/16] 0.0, 128
    %157 = vxpose.xlu0.b32.cont [14/16] 0.0, 128
    %158 = vxpose.xlu0.b32.cont [15/16] 0.0, 128
    %159 = vxpose.xlu0.b32.end [16/16] 0.0, 128
    %v160 = vpop.trf.xlu0
    %v161 = vpop.trf.xlu0
    %v162 = vpop.trf.xlu0
    %v163 = vpop.trf.xlu0
    %v164 = vpop.trf.xlu0
    %v165 = vpop.trf.xlu0
    %v166 = vpop.trf.xlu0
    %v167 = vpop.trf.xlu0
    %v168 = vpop.trf.xlu0
    %v169 = vpop.trf.xlu0
    %v170 = vpop.trf.xlu0
    %v171 = vpop.trf.xlu0
    %v172 = vpop.trf.xlu0
    %v173 = vpop.trf.xlu0
    %v174 = vpop.trf.xlu0
    %v175 = vpop.trf.xlu0
    %vm176 = vcmask 64512
    %177 = vst.msk [vmem:[#allocation7] sm:$0xff] %vm176, %v160
    // Predicated region
    $region22: #{tpu_custom_call.1} parent=1 // pred_check
      _
    $region23: #{tpu_custom_call.1} parent=1 // pred_check_branch
      %179 = sbr.rel (0) target = $region25
    $region24: #{tpu_custom_call.1} parent=1 // pred_region
      %s181 = ssub.s32 128, 128
      %182 = vsyncadd [#allocation4], %s181
      %s184 = sshll.u32 [#allocation7], 4
      %s185 = int_to_ptr.vmem [resolvable:$true] %s184
      %187 = dma.vmem_to_hbm [thread:$0]  %s185, 128, %s3, [#allocation4]
    $region25: #{tpu_custom_call.1} parent=1 // pred_fallthru
      _
    // Predicated region
    $region26: #{tpu_custom_call.1} parent=1 // pred_check
      _
    $region27: #{tpu_custom_call.1} parent=1 // pred_check_branch
      %189 = sbr.rel (0) target = $region29
    $region28: #{tpu_custom_call.1} parent=1 // pred_region
      %190 = dma.done [#allocation4], 128
    $region29: #{tpu_custom_call.1} parent=1 // pred_fallthru
      _
    %191 = vsyncpa [#allocation3], 1
    %192 = vsyncpa [#allocation6], 1
    %193 = vsyncpa [#allocation4], 1

</llo_original>
